<compile_context>
chip_gen: v6e
topology: v6e:2x2x1
jax: 0.10.0
libtpu: 0.0.40
codegen_flags: <defaults>
</compile_context>

<pallas_src>
import jax
import jax.numpy as jnp
from jax.experimental import pallas as pl
from jax.experimental.pallas import tpu as pltpu

IN1 = 288      # features per state (288 + 288 = 576 after concat)
HID = 256
OUT = 12
TB_MAX = 1024  # batch tile: ~6 MiB VMEM with double buffering -> safe on v5e/v6e/v7x


def gnet_kernel(s1_ref, s2_ref, w1a_ref, w1b_ref, b1_ref, w2_ref, b2_ref, out_ref):
    # In-kernel bf16 cast of the f32 activation tiles (VPU), f32 MXU accumulation.
    s1 = s1_ref[...].astype(jnp.bfloat16)
    s2 = s2_ref[...].astype(jnp.bfloat16)

    # --- linear1 on the concatenated input (concat folded into two matmuls) ---
    h = jnp.dot(s1, w1a_ref[...], preferred_element_type=jnp.float32)
    h = h + jnp.dot(s2, w1b_ref[...], preferred_element_type=jnp.float32)
    h = h + b1_ref[...]                    # (TB, 256) + (1, 256), f32
    h = jnp.maximum(h, 0.0)                # ReLU in f32

    # --- linear2 (bf16 MXU, f32 accumulation) ---
    logits = jnp.dot(h.astype(jnp.bfloat16), w2_ref[...],
                     preferred_element_type=jnp.float32)
    logits = logits + b2_ref[...]          # (TB, 12) + (1, 12), f32

    # --- softmax over dim=1 (last axis), numerically stable, f32 ---
    m = jnp.max(logits, axis=-1, keepdims=True)
    e = jnp.exp(logits - m)
    denom = jnp.sum(e, axis=-1, keepdims=True)
    inv = pl.reciprocal(denom, approx=True)      # EUP slot, frees VALU
    out_ref[...] = (e * inv).astype(out_ref.dtype)


def prepare_gnet_params(w1, b1, w2, b2):
    """One-time weight prep (hoisted out of the per-call path).

    w1: (576, 256), b1: (256,), w2: (256, 12), b2: (12,) — stored transposed
    vs. PyTorch (in_features, out_features) so the kernel computes y = x @ W + b.
    Returns bf16 weight halves and f32 row-vector biases.
    """
    w1a = jnp.asarray(w1[:IN1, :], dtype=jnp.bfloat16)    # (288, 256) for state1
    w1b = jnp.asarray(w1[IN1:, :], dtype=jnp.bfloat16)    # (288, 256) for state2
    w2b = jnp.asarray(w2, dtype=jnp.bfloat16)              # (256, 12)
    b1_2d = jnp.asarray(b1, dtype=jnp.float32).reshape(1, HID)
    b2_2d = jnp.asarray(b2, dtype=jnp.float32).reshape(1, OUT)
    return (w1a, w1b, b1_2d, w2b, b2_2d)


def gnet_forward(state1, state2, params, *, tb=TB_MAX):
    """state1/state2: (B, 288) f32.  params: output of prepare_gnet_params()."""
    w1a, w1b, b1_2d, w2b, b2_2d = params
    B = state1.shape[0]

    # f32 activation tiles: min tile is (8, 128); last dim (288) equals the full
    # array dim, so only the sublane dim needs rounding to 8. Partial last blocks
    # are fine: rows are independent, OOB output rows are dropped by masked store.
    TB = min(tb, max(8, ((B + 7) // 8) * 8))
    grid = (pl.cdiv(B, TB),)

    s1 = jnp.asarray(state1, dtype=jnp.float32)
    s2 = jnp.asarray(state2, dtype=jnp.float32)

    # Activation tiles walk the batch; weights/biases sit on block (0, 0)
    # (same block index every step -> VMEM-resident, no re-DMA).
    act = lambda shape: pl.BlockSpec(shape, lambda i: (i, 0))
    const = lambda shape: pl.BlockSpec(shape, lambda i: (0, 0))

    flops = 2 * B * (2 * IN1 * HID + HID * OUT)
    bytes_accessed = (
        2 * B * IN1 * 4                         # f32 activations in
        + (2 * IN1 * HID + HID * OUT) * 2       # bf16 weights
        + (HID + OUT) * 4                       # f32 biases
        + B * OUT * 4                           # f32 output
    )
    cost = pl.CostEstimate(flops=flops,
                           bytes_accessed=bytes_accessed,
                           transcendentals=B * OUT)

    return pl.pallas_call(
        gnet_kernel,
        out_shape=jax.ShapeDtypeStruct((B, OUT), jnp.float32),
        grid=grid,
        in_specs=[
            act((TB, IN1)),        # state1 tile (f32, cast to bf16 in-kernel)
            act((TB, IN1)),        # state2 tile (f32, cast to bf16 in-kernel)
            const((IN1, HID)),     # W1 top half    (resident, bf16)
            const((IN1, HID)),     # W1 bottom half (resident, bf16)
            const((1, HID)),       # b1             (resident, f32)
            const((HID, OUT)),     # W2             (resident, bf16)
            const((1, OUT)),       # b2             (resident, f32)
        ],
        out_specs=act((TB, OUT)),
        compiler_params=pltpu.CompilerParams(
            dimension_semantics=("parallel",),   # megacore sharding on v7x
        ),
        cost_estimate=cost,
    )(s1, s2, w1a, w1b, b1_2d, w2b, b2_2d)


def gnet_reference(state1, state2, w1, b1, w2, b2):
    x = jnp.concatenate([state1, state2], axis=1)
    h = jnp.maximum(x @ w1 + b1, 0.0)
    logits = h @ w2 + b2
    return jax.nn.softmax(logits, axis=1)


if __name__ == "__main__":
    key = jax.random.PRNGKey(0)
    k_s1, k_s2, k_w1, k_b1, k_w2, k_b2, k_big1, k_big2 = jax.random.split(key, 8)

    # Deterministic parameter init (PyTorch Linear-style uniform bounds).
    bound1 = 1.0 / jnp.sqrt(jnp.float32(2 * IN1))
    w1 = jax.random.uniform(k_w1, (2 * IN1, HID), jnp.float32, -bound1, bound1)
    b1 = jax.random.uniform(k_b1, (HID,), jnp.float32, -bound1, bound1)
    bound2 = 1.0 / jnp.sqrt(jnp.float32(HID))
    w2 = jax.random.uniform(k_w2, (HID, OUT), jnp.float32, -bound2, bound2)
    b2 = jax.random.uniform(k_b2, (OUT,), jnp.float32, -bound2, bound2)

    # One-time weight prep (hoisted out of the per-call path).
    params = prepare_gnet_params(w1, b1, w2, b2)
    params = jax.block_until_ready(params)

    # --- small-batch case (matches the module's deployment usage) ---
    B = 2
    state1 = jax.random.normal(k_s1, (B, IN1), dtype=jnp.float32)
    state2 = jax.random.normal(k_s2, (B, IN1), dtype=jnp.float32)

    out = gnet_forward(state1, state2, params)
    out = jax.block_until_ready(out)
    ref = gnet_reference(state1, state2, w1, b1, w2, b2)
    assert out.shape == (B, OUT)
    assert jnp.allclose(jnp.sum(out, axis=1), 1.0, atol=5e-3)
    # bf16 matmuls + approx reciprocal -> looser tolerance vs f32 reference.
    assert jnp.allclose(out, ref, atol=2e-2, rtol=2e-2)

    # --- larger batch: exercises the grid (multiple steps + a partial block) ---
    B2 = 2200
    big1 = jax.random.normal(k_big1, (B2, IN1), dtype=jnp.float32)
    big2 = jax.random.normal(k_big2, (B2, IN1), dtype=jnp.float32)
    out2 = jax.block_until_ready(gnet_forward(big1, big2, params))
    ref2 = gnet_reference(big1, big2, w1, b1, w2, b2)
    assert out2.shape == (B2, OUT)
    assert jnp.allclose(jnp.sum(out2, axis=1), 1.0, atol=5e-3)
    assert jnp.allclose(out2, ref2, atol=2e-2, rtol=2e-2)

    print("KERNEL_OK")
</pallas_src>

<mosaic_0001>
module attributes {stable_mosaic.version = 11 : i64} {
  func.func @gnet_kernel(%arg0: i32, %arg1: memref<8x288xf32, #tpu.memory_space<vmem>>, %arg2: memref<8x288xf32, #tpu.memory_space<vmem>>, %arg3: memref<288x256xbf16, #tpu.memory_space<vmem>>, %arg4: memref<288x256xbf16, #tpu.memory_space<vmem>>, %arg5: memref<1x256xf32, #tpu.memory_space<vmem>>, %arg6: memref<256x12xbf16, #tpu.memory_space<vmem>>, %arg7: memref<1x12xf32, #tpu.memory_space<vmem>>, %arg8: memref<8x12xf32, #tpu.memory_space<vmem>>) attributes {dimension_semantics = [#tpu.dimension_semantics<parallel>], iteration_bounds = array<i64: 1>, scalar_prefetch = 0 : i64, scratch_operands = 0 : i64, tpu.core_type = #tpu.core_type<tc>, window_params = [{transform_indices = @transform_0, window_bounds = array<i64: 8, 288>}, {transform_indices = @transform_1, window_bounds = array<i64: 8, 288>}, {pipeline_mode = #tpu.pipeline_mode<synchronous>, transform_indices = @transform_2, window_bounds = array<i64: 288, 256>}, {pipeline_mode = #tpu.pipeline_mode<synchronous>, transform_indices = @transform_3, window_bounds = array<i64: 288, 256>}, {pipeline_mode = #tpu.pipeline_mode<synchronous>, transform_indices = @transform_4, window_bounds = array<i64: 1, 256>}, {pipeline_mode = #tpu.pipeline_mode<synchronous>, transform_indices = @transform_5, window_bounds = array<i64: 256, 12>}, {pipeline_mode = #tpu.pipeline_mode<synchronous>, transform_indices = @transform_6, window_bounds = array<i64: 1, 12>}, {transform_indices = @transform_7, window_bounds = array<i64: 8, 12>}]} {
    %c0 = arith.constant 0 : index
    %c0_0 = arith.constant 0 : index
    %0 = vector.load %arg1[%c0, %c0_0] : memref<8x288xf32, #tpu.memory_space<vmem>>, vector<8x288xf32>
    %1 = arith.truncf %0 : vector<8x288xf32> to vector<8x288xbf16>
    %c0_1 = arith.constant 0 : index
    %c0_2 = arith.constant 0 : index
    %2 = vector.load %arg2[%c0_1, %c0_2] : memref<8x288xf32, #tpu.memory_space<vmem>>, vector<8x288xf32>
    %3 = arith.truncf %2 : vector<8x288xf32> to vector<8x288xbf16>
    %c0_3 = arith.constant 0 : index
    %c0_4 = arith.constant 0 : index
    %4 = vector.load %arg3[%c0_3, %c0_4] : memref<288x256xbf16, #tpu.memory_space<vmem>>, vector<288x256xbf16>
    %cst = arith.constant dense<0.000000e+00> : vector<8x256xf32>
    %5 = tpu.matmul %1, %4, %cst {dimension_numbers = #tpu.dot_dimension_numbers<[1], [0], [0], [1], [0, 0, 1, 1], [], []>} : vector<8x288xbf16>, vector<288x256xbf16>, vector<8x256xf32> -> vector<8x256xf32>
    %c0_5 = arith.constant 0 : index
    %c0_6 = arith.constant 0 : index
    %6 = vector.load %arg4[%c0_5, %c0_6] : memref<288x256xbf16, #tpu.memory_space<vmem>>, vector<288x256xbf16>
    %cst_7 = arith.constant dense<0.000000e+00> : vector<8x256xf32>
    %7 = tpu.matmul %3, %6, %cst_7 {dimension_numbers = #tpu.dot_dimension_numbers<[1], [0], [0], [1], [0, 0, 1, 1], [], []>} : vector<8x288xbf16>, vector<288x256xbf16>, vector<8x256xf32> -> vector<8x256xf32>
    %8 = arith.addf %5, %7 : vector<8x256xf32>
    %c0_8 = arith.constant 0 : index
    %c0_9 = arith.constant 0 : index
    %9 = vector.load %arg5[%c0_8, %c0_9] : memref<1x256xf32, #tpu.memory_space<vmem>>, vector<1x256xf32>
    %10 = vector.broadcast %9 : vector<1x256xf32> to vector<8x256xf32>
    %11 = arith.addf %8, %10 : vector<8x256xf32>
    %cst_10 = arith.constant 0.000000e+00 : f32
    %12 = vector.broadcast %cst_10 : f32 to vector<8x256xf32>
    %13 = arith.maximumf %11, %12 : vector<8x256xf32>
    %14 = arith.truncf %13 : vector<8x256xf32> to vector<8x256xbf16>
    %c0_11 = arith.constant 0 : index
    %c0_12 = arith.constant 0 : index
    %15 = vector.load %arg6[%c0_11, %c0_12] : memref<256x12xbf16, #tpu.memory_space<vmem>>, vector<256x12xbf16>
    %cst_13 = arith.constant dense<0.000000e+00> : vector<8x12xf32>
    %16 = tpu.matmul %14, %15, %cst_13 {dimension_numbers = #tpu.dot_dimension_numbers<[1], [0], [0], [1], [0, 0, 1, 1], [], []>} : vector<8x256xbf16>, vector<256x12xbf16>, vector<8x12xf32> -> vector<8x12xf32>
    %c0_14 = arith.constant 0 : index
    %c0_15 = arith.constant 0 : index
    %17 = vector.load %arg7[%c0_14, %c0_15] : memref<1x12xf32, #tpu.memory_space<vmem>>, vector<1x12xf32>
    %18 = vector.broadcast %17 : vector<1x12xf32> to vector<8x12xf32>
    %19 = arith.addf %16, %18 : vector<8x12xf32>
    %cst_16 = arith.constant dense<0xFF800000> : vector<8xf32>
    %20 = vector.multi_reduction <maximumf>, %19, %cst_16 [1] : vector<8x12xf32> to vector<8xf32>
    %21 = vector.shape_cast %20 : vector<8xf32> to vector<8x1xf32>
    %22 = vector.broadcast %21 : vector<8x1xf32> to vector<8x12xf32>
    %23 = arith.subf %19, %22 : vector<8x12xf32>
    %24 = math.exp %23 : vector<8x12xf32>
    %cst_17 = arith.constant dense<0.000000e+00> : vector<8xf32>
    %25 = vector.multi_reduction <add>, %24, %cst_17 [1] : vector<8x12xf32> to vector<8xf32>
    %26 = vector.shape_cast %25 : vector<8xf32> to vector<8x1xf32>
    %27 = tpu.reciprocal %26 {approx = true} : vector<8x1xf32> -> vector<8x1xf32>
    %28 = vector.broadcast %27 : vector<8x1xf32> to vector<8x12xf32>
    %29 = arith.mulf %24, %28 : vector<8x12xf32>
    %c0_18 = arith.constant 0 : index
    %c0_19 = arith.constant 0 : index
    %30 = vector.load %arg8[%c0_18, %c0_19] : memref<8x12xf32, #tpu.memory_space<vmem>>, vector<8x12xf32>
    tpu.vector_store %arg8[%c0_18, %c0_19], %29 {strides = array<i32>} : memref<8x12xf32, #tpu.memory_space<vmem>>, vector<8x12xf32>,
    return
  }
  func.func @transform_0(%arg0: i32) -> (i32, i32) {
    %c0_i32 = arith.constant 0 : i32
    %c0_i32_0 = arith.constant 0 : i32
    return %arg0, %c0_i32 : i32, i32
  }
  func.func @transform_1(%arg0: i32) -> (i32, i32) {
    %c0_i32 = arith.constant 0 : i32
    %c0_i32_0 = arith.constant 0 : i32
    return %arg0, %c0_i32 : i32, i32
  }
  func.func @transform_2(%arg0: i32) -> (i32, i32) {
    %c0_i32 = arith.constant 0 : i32
    %c0_i32_0 = arith.constant 0 : i32
    %c0_i32_1 = arith.constant 0 : i32
    return %c0_i32, %c0_i32_0 : i32, i32
  }
  func.func @transform_3(%arg0: i32) -> (i32, i32) {
    %c0_i32 = arith.constant 0 : i32
    %c0_i32_0 = arith.constant 0 : i32
    %c0_i32_1 = arith.constant 0 : i32
    return %c0_i32, %c0_i32_0 : i32, i32
  }
  func.func @transform_4(%arg0: i32) -> (i32, i32) {
    %c0_i32 = arith.constant 0 : i32
    %c0_i32_0 = arith.constant 0 : i32
    %c0_i32_1 = arith.constant 0 : i32
    return %c0_i32, %c0_i32_0 : i32, i32
  }
  func.func @transform_5(%arg0: i32) -> (i32, i32) {
    %c0_i32 = arith.constant 0 : i32
    %c0_i32_0 = arith.constant 0 : i32
    %c0_i32_1 = arith.constant 0 : i32
    return %c0_i32, %c0_i32_0 : i32, i32
  }
  func.func @transform_6(%arg0: i32) -> (i32, i32) {
    %c0_i32 = arith.constant 0 : i32
    %c0_i32_0 = arith.constant 0 : i32
    %c0_i32_1 = arith.constant 0 : i32
    return %c0_i32, %c0_i32_0 : i32, i32
  }
  func.func @transform_7(%arg0: i32) -> (i32, i32) {
    %c0_i32 = arith.constant 0 : i32
    %c0_i32_0 = arith.constant 0 : i32
    return %arg0, %c0_i32 : i32, i32
  }
}

</mosaic_0001>

<llo_original>
// kernel: tpu_custom_call.1
$region0: #{tpu_custom_call.1}
  #allocation0 [shape = 'u32[]', space=smem, size = 0x4, offset = 0x4, fixed_abs, tag = 'smem constant byte address 0x4 - core index']
  #allocation1 [shape = 'u32[144,128]{1,0:T(1,128)}', space=vmem, size = 0x12000, scoped, tag = 'internal scratch']
  %s0 = inlined_call_operand.vmem [shape: f32[2,288], index: 0, kind: input, shape index: {}]
  %s1 = inlined_call_operand.vmem [shape: f32[2,288], index: 1, kind: input, shape index: {}]
  %s2 = inlined_call_operand.hbm [shape: bf16[288,256], index: 2, kind: input, shape index: {}]
  %s3 = inlined_call_operand.hbm [shape: bf16[288,256], index: 3, kind: input, shape index: {}]
  %s4 = inlined_call_operand.vmem [shape: f32[1,256], index: 4, kind: input, shape index: {}]
  %s5 = inlined_call_operand.vmem [shape: bf16[256,12], index: 5, kind: input, shape index: {}]
  %s6 = inlined_call_operand.vmem [shape: f32[1,12], index: 6, kind: input, shape index: {}]
  %s7 = inlined_call_operand.hbm [shape: f32[2,12], index: 7, kind: output, shape index: {}]
  %s8 = sld [smem:[#allocation0]]
  $region46: #{tpu_custom_call.1} parent=0
    _
  %s10 = ssub.s32 1, %s8
  %s11 = scalar_select 0, %s10, %s8
  $region1: #{tpu_custom_call.1} parent=0
    #allocation2 [shape = 'u8[147456]{0}', space=vmem, size = 0x24000, scoped, tag = 'input window, operand 2, single buffered']
    #allocation3 [shape = 's32[1]{0}', space=sflag, size = 0x4, scoped, tag = 'scoped memory for tpu_custom_call.1']
    #allocation4 [shape = 's32[1]{0}', space=sflag, size = 0x4, scoped, tag = 'scoped memory for tpu_custom_call.1']
    #allocation5 [shape = 'u8[147456]{0}', space=vmem, size = 0x24000, scoped, tag = 'input window, operand 3, single buffered']
    #allocation6 [shape = 's32[1]{0}', space=sflag, size = 0x4, scoped, tag = 'scoped memory for tpu_custom_call.1']
    #allocation7 [shape = 'u8[4096]{0}', space=vmem, size = 0x1000, scoped, tag = 'output window, operand 0, single buffered']
    %12 = vsyncpa [#allocation3], 0
    %13 = vsyncpa [#allocation6], 0
    %14 = vsyncpa [#allocation4], 0
    // Predicated region
    $region2: #{tpu_custom_call.1} parent=1 // pred_check
      _
    $region3: #{tpu_custom_call.1} parent=1 // pred_check_branch
      %16 = sbr.rel (0) target = $region5
    $region4: #{tpu_custom_call.1} parent=1 // pred_region
      _
    $region5: #{tpu_custom_call.1} parent=1 // pred_fallthru
      _
    // Predicated region
    $region6: #{tpu_custom_call.1} parent=1 // pred_check
      _
    $region7: #{tpu_custom_call.1} parent=1 // pred_check_branch
      %18 = sbr.rel (0) target = $region9
    $region8: #{tpu_custom_call.1} parent=1 // pred_region
      _
    $region9: #{tpu_custom_call.1} parent=1 // pred_fallthru
      _
    // Predicated region
    $region10: #{tpu_custom_call.1} parent=1 // pred_check
      _
    $region11: #{tpu_custom_call.1} parent=1 // pred_check_branch
      %20 = sbr.rel (0) target = $region13
    $region12: #{tpu_custom_call.1} parent=1 // pred_region
      %s22 = ssub.s32 4608, 4608
      %23 = vsyncadd [#allocation3], %s22
      %s24 = sshll.u32 [#allocation2], 4
      %s25 = int_to_ptr.vmem [resolvable:$true] %s24
      %30 = dma.hbm_to_vmem [thread:$0]  %s2, 4608, %s25, [#allocation3], 128, 128, 8
    $region13: #{tpu_custom_call.1} parent=1 // pred_fallthru
      _
    // Predicated region
    $region14: #{tpu_custom_call.1} parent=1 // pred_check
      _
    $region15: #{tpu_custom_call.1} parent=1 // pred_check_branch
      %32 = sbr.rel (0) target = $region17
    $region16: #{tpu_custom_call.1} parent=1 // pred_region
      %s34 = ssub.s32 4608, 4608
      %35 = vsyncadd [#allocation6], %s34
      %s36 = sshll.u32 [#allocation5], 4
      %s37 = int_to_ptr.vmem [resolvable:$true] %s36
      %42 = dma.hbm_to_vmem [thread:$0]  %s3, 4608, %s37, [#allocation6], 128, 128, 8
    $region17: #{tpu_custom_call.1} parent=1 // pred_fallthru
      _
    // Predicated region
    $region18: #{tpu_custom_call.1} parent=1 // pred_check
      _
    $region19: #{tpu_custom_call.1} parent=1 // pred_check_branch
      %44 = sbr.rel (0) target = $region21
    $region20: #{tpu_custom_call.1} parent=1 // pred_region
      _
    $region21: #{tpu_custom_call.1} parent=1 // pred_fallthru
      _
    // Predicated region
    $region22: #{tpu_custom_call.1} parent=1 // pred_check
      _
    $region23: #{tpu_custom_call.1} parent=1 // pred_check_branch
      %46 = sbr.rel (0) target = $region25
    $region24: #{tpu_custom_call.1} parent=1 // pred_region
      _
    $region25: #{tpu_custom_call.1} parent=1 // pred_fallthru
      _
    // Predicated region
    $region26: #{tpu_custom_call.1} parent=1 // pred_check
      _
    $region27: #{tpu_custom_call.1} parent=1 // pred_check_branch
      %48 = sbr.rel (0) target = $region29
    $region28: #{tpu_custom_call.1} parent=1 // pred_region
      _
    $region29: #{tpu_custom_call.1} parent=1 // pred_fallthru
      _
    // Predicated region
    $region30: #{tpu_custom_call.1} parent=1 // pred_check
      _
    $region31: #{tpu_custom_call.1} parent=1 // pred_check_branch
      %50 = sbr.rel (0) target = $region33
    $region32: #{tpu_custom_call.1} parent=1 // pred_region
      %51 = dma.done [#allocation3], 4608
    $region33: #{tpu_custom_call.1} parent=1 // pred_fallthru
      _
    // Predicated region
    $region34: #{tpu_custom_call.1} parent=1 // pred_check
      _
    $region35: #{tpu_custom_call.1} parent=1 // pred_check_branch
      %53 = sbr.rel (0) target = $region37
    $region36: #{tpu_custom_call.1} parent=1 // pred_region
      %54 = dma.done [#allocation6], 4608
    $region37: #{tpu_custom_call.1} parent=1 // pred_fallthru
      _
    %v56 = vld [vmem:[%s0] sm:$0x3f]
    %v57 = vld [vmem:[%s0 + $0x6] sm:$0x3f]
    %v58 = vld [vmem:[%s0 + $0xc] sm:$0x3f]
    %v59 = vld [vmem:[%s0 + $0x12] sm:$0x3f]
    %v64 = vcombine.low %v56, %v57
    %v65 = vcombine.high %v56, %v57
    %v66 = vcombine.low %v58, %v59
    %v67 = vcombine.high %v58, %v59
    %v69 = vunpack.c.l.s4 1983009808
    %v70 = vunpack.c.0.s8 %v69
    %v71 = vlaneseq
    %v72 = vshrl.u32 %v71, 7
    %v73 = vsub.s32 %v70, %v72
    %v74 = vrot.slane %v64, %v73
    %v76 = vunpack.c.l.s4 1983009808
    %v77 = vunpack.c.0.s8 %v76
    %v78 = vlaneseq
    %v79 = vshrl.u32 %v78, 7
    %v80 = vsub.s32 %v77, %v79
    %v81 = vrot.slane %v65, %v80
    %v83 = vunpack.c.l.s4 1983009808
    %v84 = vunpack.c.0.s8 %v83
    %v85 = vlaneseq
    %v86 = vshrl.u32 %v85, 7
    %v87 = vsub.s32 %v84, %v86
    %v88 = vrot.slane %v66, %v87
    %v90 = vunpack.c.l.s4 1983009808
    %v91 = vunpack.c.0.s8 %v90
    %v92 = vlaneseq
    %v93 = vshrl.u32 %v92, 7
    %v94 = vsub.s32 %v91, %v93
    %v95 = vrot.slane %v67, %v94
    %v96 = vcombine.low %v74, %v88
    %v97 = vcombine.high %v74, %v88
    %v98 = vcombine.low %v81, %v95
    %v102 = vpack.c.bf16 %v96, %v96
    %v103 = vpack.c.bf16 %v97, %v97
    %v104 = vpack.c.bf16 %v98, %v98
    %v105 = vld [vmem:[%s1] sm:$0x3f]
    %v106 = vld [vmem:[%s1 + $0x6] sm:$0x3f]
    %v107 = vld [vmem:[%s1 + $0xc] sm:$0x3f]
    %v108 = vld [vmem:[%s1 + $0x12] sm:$0x3f]
    %v113 = vcombine.low %v105, %v106
    %v114 = vcombine.high %v105, %v106
    %v115 = vcombine.low %v107, %v108
    %v116 = vcombine.high %v107, %v108
    %v118 = vunpack.c.l.s4 1983009808
    %v119 = vunpack.c.0.s8 %v118
    %v120 = vlaneseq
    %v121 = vshrl.u32 %v120, 7
    %v122 = vsub.s32 %v119, %v121
    %v123 = vrot.slane %v113, %v122
    %v125 = vunpack.c.l.s4 1983009808
    %v126 = vunpack.c.0.s8 %v125
    %v127 = vlaneseq
    %v128 = vshrl.u32 %v127, 7
    %v129 = vsub.s32 %v126, %v128
    %v130 = vrot.slane %v114, %v129
    %v132 = vunpack.c.l.s4 1983009808
    %v133 = vunpack.c.0.s8 %v132
    %v134 = vlaneseq
    %v135 = vshrl.u32 %v134, 7
    %v136 = vsub.s32 %v133, %v135
    %v137 = vrot.slane %v115, %v136
    %v139 = vunpack.c.l.s4 1983009808
    %v140 = vunpack.c.0.s8 %v139
    %v141 = vlaneseq
    %v142 = vshrl.u32 %v141, 7
    %v143 = vsub.s32 %v140, %v142
    %v144 = vrot.slane %v116, %v143
    %v145 = vcombine.low %v123, %v137
    %v146 = vcombine.high %v123, %v137
    %v147 = vcombine.low %v130, %v144
    %v151 = vpack.c.bf16 %v145, %v145
    %v152 = vpack.c.bf16 %v146, %v146
    %v153 = vpack.c.bf16 %v147, %v147
    %v154 = vld [vmem:[#allocation2] sm:$0xff]
    %v155 = vld [vmem:[#allocation2 + $0x8] sm:$0xff]
    %v156 = vld [vmem:[#allocation2 + $0x10] sm:$0xff]
    %v157 = vld [vmem:[#allocation2 + $0x18] sm:$0xff]
    %v158 = vld [vmem:[#allocation2 + $0x20] sm:$0xff]
    %v159 = vld [vmem:[#allocation2 + $0x28] sm:$0xff]
    %v160 = vld [vmem:[#allocation2 + $0x30] sm:$0xff]
    %v161 = vld [vmem:[#allocation2 + $0x38] sm:$0xff]
    %v162 = vld [vmem:[#allocation2 + $0x40] sm:$0xff]
    %v163 = vld [vmem:[#allocation2 + $0x48] sm:$0xff]
    %v164 = vld [vmem:[#allocation2 + $0x50] sm:$0xff]
    %v165 = vld [vmem:[#allocation2 + $0x58] sm:$0xff]
    %v166 = vld [vmem:[#allocation2 + $0x60] sm:$0xff]
    %v167 = vld [vmem:[#allocation2 + $0x68] sm:$0xff]
    %v168 = vld [vmem:[#allocation2 + $0x70] sm:$0xff]
    %v169 = vld [vmem:[#allocation2 + $0x78] sm:$0xff]
    %v170 = vld [vmem:[#allocation2 + $0x80] sm:$0xff]
    %v171 = vld [vmem:[#allocation2 + $0x88] sm:$0xff]
    %v172 = vld [vmem:[#allocation2 + $0x90] sm:$0xff]
    %v173 = vld [vmem:[#allocation2 + $0x98] sm:$0xff]
    %v174 = vld [vmem:[#allocation2 + $0xa0] sm:$0xff]
    %v175 = vld [vmem:[#allocation2 + $0xa8] sm:$0xff]
    %v176 = vld [vmem:[#allocation2 + $0xb0] sm:$0xff]
    %v177 = vld [vmem:[#allocation2 + $0xb8] sm:$0xff]
    %v178 = vld [vmem:[#allocation2 + $0xc0] sm:$0xff]
    %v179 = vld [vmem:[#allocation2 + $0xc8] sm:$0xff]
    %v180 = vld [vmem:[#allocation2 + $0xd0] sm:$0xff]
    %v181 = vld [vmem:[#allocation2 + $0xd8] sm:$0xff]
    %v182 = vld [vmem:[#allocation2 + $0xe0] sm:$0xff]
    %v183 = vld [vmem:[#allocation2 + $0xe8] sm:$0xff]
    %v184 = vld [vmem:[#allocation2 + $0xf0] sm:$0xff]
    %v185 = vld [vmem:[#allocation2 + $0xf8] sm:$0xff]
    %v186 = vld [vmem:[#allocation2 + $0x100] sm:$0xff]
    %v187 = vld [vmem:[#allocation2 + $0x108] sm:$0xff]
    %v188 = vld [vmem:[#allocation2 + $0x110] sm:$0xff]
    %v189 = vld [vmem:[#allocation2 + $0x118] sm:$0xff]
    %v190 = vld [vmem:[#allocation5] sm:$0xff]
    %v191 = vld [vmem:[#allocation5 + $0x8] sm:$0xff]
    %v192 = vld [vmem:[#allocation5 + $0x10] sm:$0xff]
    %v193 = vld [vmem:[#allocation5 + $0x18] sm:$0xff]
    %v194 = vld [vmem:[#allocation5 + $0x20] sm:$0xff]
    %v195 = vld [vmem:[#allocation5 + $0x28] sm:$0xff]
    %v196 = vld [vmem:[#allocation5 + $0x30] sm:$0xff]
    %v197 = vld [vmem:[#allocation5 + $0x38] sm:$0xff]
    %v198 = vld [vmem:[#allocation5 + $0x40] sm:$0xff]
    %v199 = vld [vmem:[#allocation5 + $0x48] sm:$0xff]
    %v200 = vld [vmem:[#allocation5 + $0x50] sm:$0xff]
    %v201 = vld [vmem:[#allocation5 + $0x58] sm:$0xff]
    %v202 = vld [vmem:[#allocation5 + $0x60] sm:$0xff]
    %v203 = vld [vmem:[#allocation5 + $0x68] sm:$0xff]
    %v204 = vld [vmem:[#allocation5 + $0x70] sm:$0xff]
    %v205 = vld [vmem:[#allocation5 + $0x78] sm:$0xff]
    %v206 = vld [vmem:[#allocation5 + $0x80] sm:$0xff]
    %v207 = vld [vmem:[#allocation5 + $0x88] sm:$0xff]
    %v208 = vld [vmem:[#allocation5 + $0x90] sm:$0xff]
    %v209 = vld [vmem:[#allocation5 + $0x98] sm:$0xff]
    %v210 = vld [vmem:[#allocation5 + $0xa0] sm:$0xff]
    %v211 = vld [vmem:[#allocation5 + $0xa8] sm:$0xff]
    %v212 = vld [vmem:[#allocation5 + $0xb0] sm:$0xff]
    %v213 = vld [vmem:[#allocation5 + $0xb8] sm:$0xff]
    %v214 = vld [vmem:[#allocation5 + $0xc0] sm:$0xff]
    %v215 = vld [vmem:[#allocation5 + $0xc8] sm:$0xff]
    %v216 = vld [vmem:[#allocation5 + $0xd0] sm:$0xff]
    %v217 = vld [vmem:[#allocation5 + $0xd8] sm:$0xff]
    %v218 = vld [vmem:[#allocation5 + $0xe0] sm:$0xff]
    %v219 = vld [vmem:[#allocation5 + $0xe8] sm:$0xff]
    %v220 = vld [vmem:[#allocation5 + $0xf0] sm:$0xff]
    %v221 = vld [vmem:[#allocation5 + $0xf8] sm:$0xff]
    %v222 = vld [vmem:[#allocation5 + $0x100] sm:$0xff]
    %v223 = vld [vmem:[#allocation5 + $0x108] sm:$0xff]
    %v224 = vld [vmem:[#allocation5 + $0x110] sm:$0xff]
    %v225 = vld [vmem:[#allocation5 + $0x118] sm:$0xff]
    %v262 = vunpack.c.l.b16 %v190
    %v263 = vunpack.c.h.b16 %v190
    %v264 = vunpack.c.l.b16 %v191
    %v265 = vunpack.c.h.b16 %v191
    %v266 = vunpack.c.l.b16 %v192
    %v267 = vunpack.c.h.b16 %v192
    %v268 = vunpack.c.l.b16 %v193
    %v269 = vunpack.c.h.b16 %v193
    %v270 = vunpack.c.l.b16 %v194
    %v271 = vunpack.c.h.b16 %v194
    %v272 = vunpack.c.l.b16 %v195
    %v273 = vunpack.c.h.b16 %v195
    %v274 = vunpack.c.l.b16 %v196
    %v275 = vunpack.c.h.b16 %v196
    %v276 = vunpack.c.l.b16 %v197
    %v277 = vunpack.c.h.b16 %v197
    %v278 = vunpack.c.l.b16 %v198
    %v279 = vunpack.c.h.b16 %v198
    %v280 = vunpack.c.l.b16 %v199
    %v281 = vunpack.c.h.b16 %v199
    %v282 = vunpack.c.l.b16 %v200
    %v283 = vunpack.c.h.b16 %v200
    %v284 = vunpack.c.l.b16 %v201
    %v285 = vunpack.c.h.b16 %v201
    %v286 = vunpack.c.l.b16 %v202
    %v287 = vunpack.c.h.b16 %v202
    %v288 = vunpack.c.l.b16 %v203
    %v289 = vunpack.c.h.b16 %v203
    %v290 = vunpack.c.l.b16 %v204
    %v291 = vunpack.c.h.b16 %v204
    %v292 = vunpack.c.l.b16 %v205
    %v293 = vunpack.c.h.b16 %v205
    %v294 = vunpack.c.l.b16 %v206
    %v295 = vunpack.c.h.b16 %v206
    %v296 = vunpack.c.l.b16 %v207
    %v297 = vunpack.c.h.b16 %v207
    %v298 = vunpack.c.l.b16 %v208
    %v299 = vunpack.c.h.b16 %v208
    %v300 = vunpack.c.l.b16 %v209
    %v301 = vunpack.c.h.b16 %v209
    %v302 = vunpack.c.l.b16 %v210
    %v303 = vunpack.c.h.b16 %v210
    %v304 = vunpack.c.l.b16 %v211
    %v305 = vunpack.c.h.b16 %v211
    %v306 = vunpack.c.l.b16 %v212
    %v307 = vunpack.c.h.b16 %v212
    %v308 = vunpack.c.l.b16 %v213
    %v309 = vunpack.c.h.b16 %v213
    %v310 = vunpack.c.l.b16 %v214
    %v311 = vunpack.c.h.b16 %v214
    %v312 = vunpack.c.l.b16 %v215
    %v313 = vunpack.c.h.b16 %v215
    %v314 = vunpack.c.l.b16 %v216
    %v315 = vunpack.c.h.b16 %v216
    %v316 = vunpack.c.l.b16 %v217
    %v317 = vunpack.c.h.b16 %v217
    %v318 = vunpack.c.l.b16 %v218
    %v319 = vunpack.c.h.b16 %v218
    %v320 = vunpack.c.l.b16 %v219
    %v321 = vunpack.c.h.b16 %v219
    %v322 = vunpack.c.l.b16 %v220
    %v323 = vunpack.c.h.b16 %v220
    %v324 = vunpack.c.l.b16 %v221
    %v325 = vunpack.c.h.b16 %v221
    %v326 = vunpack.c.l.b16 %v222
    %v327 = vunpack.c.h.b16 %v222
    %v328 = vunpack.c.l.b16 %v223
    %v329 = vunpack.c.h.b16 %v223
    %v330 = vunpack.c.l.b16 %v224
    %v331 = vunpack.c.h.b16 %v224
    %v332 = vunpack.c.l.b16 %v225
    %v333 = vunpack.c.h.b16 %v225
    %v334 = vpack.c.b16 %v264, %v262
    %v335 = vpack.c.b16 %v265, %v263
    %v336 = vpack.c.b16 %v268, %v266
    %v337 = vpack.c.b16 %v269, %v267
    %v338 = vpack.c.b16 %v272, %v270
    %v339 = vpack.c.b16 %v273, %v271
    %v340 = vpack.c.b16 %v276, %v274
    %v341 = vpack.c.b16 %v277, %v275
    %v342 = vpack.c.b16 %v280, %v278
    %v343 = vpack.c.b16 %v281, %v279
    %v344 = vpack.c.b16 %v284, %v282
    %v345 = vpack.c.b16 %v285, %v283
    %v346 = vpack.c.b16 %v288, %v286
    %v347 = vpack.c.b16 %v289, %v287
    %v348 = vpack.c.b16 %v292, %v290
    %v349 = vpack.c.b16 %v293, %v291
    %v350 = vpack.c.b16 %v296, %v294
    %v351 = vpack.c.b16 %v297, %v295
    %v352 = vpack.c.b16 %v300, %v298
    %v353 = vpack.c.b16 %v301, %v299
    %v354 = vpack.c.b16 %v304, %v302
    %v355 = vpack.c.b16 %v305, %v303
    %v356 = vpack.c.b16 %v308, %v306
    %v357 = vpack.c.b16 %v309, %v307
    %v358 = vpack.c.b16 %v312, %v310
    %v359 = vpack.c.b16 %v313, %v311
    %v360 = vpack.c.b16 %v316, %v314
    %v361 = vpack.c.b16 %v317, %v315
    %v362 = vpack.c.b16 %v320, %v318
    %v363 = vpack.c.b16 %v321, %v319
    %v364 = vpack.c.b16 %v324, %v322
    %v365 = vpack.c.b16 %v325, %v323
    %v366 = vpack.c.b16 %v328, %v326
    %v367 = vpack.c.b16 %v329, %v327
    %v368 = vpack.c.b16 %v332, %v330
    %v369 = vpack.c.b16 %v333, %v331
    %vm406 = vcmask 261120
    %v408 = vsel %vm406, %v153, 0
    %410 = vmatprep.subr.bf16.mxu0 %v349
    %411 = vmatpush1.bf16.msra.mxu0 %v348
    %412 = vmatprep.subr.bf16.mxu0 %v347
    %413 = vmatpush1.bf16.msra.mxu0 %v346
    %414 = vmatprep.subr.bf16.mxu0 %v345
    %415 = vmatpush1.bf16.msra.mxu0 %v344
    %416 = vmatprep.subr.bf16.mxu0 %v343
    %417 = vmatpush1.bf16.msra.mxu0 %v342
    %418 = vmatprep.subr.bf16.mxu0 %v341
    %419 = vmatpush1.bf16.msra.mxu0 %v340
    %420 = vmatprep.subr.bf16.mxu0 %v339
    %421 = vmatpush1.bf16.msra.mxu0 %v338
    %422 = vmatprep.subr.bf16.mxu0 %v337
    %423 = vmatpush1.bf16.msra.mxu0 %v336
    %424 = vmatprep.subr.bf16.mxu0 %v335
    %425 = vmatpush1.bf16.msra.mxu0 %v334
    %426 = vmatprep.subr.bf16.mxu0 %v365
    %427 = vmatpush2.bf16.msra.mxu0 %v364
    %428 = vmatprep.subr.bf16.mxu0 %v363
    %429 = vmatpush2.bf16.msra.mxu0 %v362
    %430 = vmatprep.subr.bf16.mxu0 %v361
    %431 = vmatpush2.bf16.msra.mxu0 %v360
    %432 = vmatprep.subr.bf16.mxu0 %v359
    %433 = vmatpush2.bf16.msra.mxu0 %v358
    %434 = vmatprep.subr.bf16.mxu0 %v357
    %435 = vmatpush2.bf16.msra.mxu0 %v356
    %436 = vmatprep.subr.bf16.mxu0 %v355
    %437 = vmatpush2.bf16.msra.mxu0 %v354
    %438 = vmatprep.subr.bf16.mxu0 %v353
    %439 = vmatpush2.bf16.msra.mxu0 %v352
    %440 = vmatprep.subr.bf16.mxu0 %v351
    %441 = vmatpush2.bf16.msra.mxu0 %v350
    %442 = vmatprep.mubr.bf16.mxu0 %v152
    %443 = vmatmul.mubr.bf16.gmra.mxu0 %v151
    %v444 = vpop.f32.mrf.mxu0
    %v445 = vadd.f32 0.0, %v444
    %v446 = vpop.f32.mrf.mxu0
    %v447 = vadd.f32 0.0, %v446
    %v448 = vpop.f32.mrf.mxu0
    %v449 = vpop.f32.mrf.mxu0
    %450 = vdwg.mxu0
    %451 = vmatprep.subr.bf16.mxu0 0
    %452 = vmatpush1.bf16.msra.mxu0 0
    %453 = vmatprep.subr.bf16.mxu0 0
    %454 = vmatpush1.bf16.msra.mxu0 0
    %455 = vmatprep.subr.bf16.mxu0 0
    %456 = vmatpush1.bf16.msra.mxu0 0
    %457 = vmatprep.subr.bf16.mxu0 0
    %458 = vmatpush1.bf16.msra.mxu0 0
    %459 = vmatprep.subr.bf16.mxu0 0
    %460 = vmatpush1.bf16.msra.mxu0 0
    %461 = vmatprep.subr.bf16.mxu0 0
    %462 = vmatpush1.bf16.msra.mxu0 0
    %463 = vmatprep.subr.bf16.mxu0 %v369
    %464 = vmatpush1.bf16.msra.mxu0 %v368
    %465 = vmatprep.subr.bf16.mxu0 %v367
    %466 = vmatpush1.bf16.msra.mxu0 %v366
    %467 = vmatprep.subr.bf16.mxu0 0
    %468 = vmatpush2.bf16.msra.mxu0 0
    %469 = vmatprep.subr.bf16.mxu0 0
    %470 = vmatpush2.bf16.msra.mxu0 0
    %471 = vmatprep.subr.bf16.mxu0 0
    %472 = vmatpush2.bf16.msra.mxu0 0
    %473 = vmatprep.subr.bf16.mxu0 0
    %474 = vmatpush2.bf16.msra.mxu0 0
    %475 = vmatprep.subr.bf16.mxu0 0
    %476 = vmatpush2.bf16.msra.mxu0 0
    %477 = vmatprep.subr.bf16.mxu0 0
    %478 = vmatpush2.bf16.msra.mxu0 0
    %479 = vmatprep.subr.bf16.mxu0 0
    %480 = vmatpush2.bf16.msra.mxu0 0
    %481 = vmatprep.subr.bf16.mxu0 0
    %482 = vmatpush2.bf16.msra.mxu0 0
    %483 = vmatprep.mubr.bf16.mxu0 0
    %484 = vmatmul.mubr.bf16.gmra.mxu0 %v408
    %v485 = vpop.f32.mrf.mxu0
    %v486 = vadd.f32 %v445, %v485
    %v487 = vpop.f32.mrf.mxu0
    %v488 = vadd.f32 %v447, %v487
    %v489 = vpop.f32.mrf.mxu0
    %v490 = vpop.f32.mrf.mxu0
    %491 = vdwg.mxu0
    %v528 = vunpack.c.l.b16 %v154
    %v529 = vunpack.c.h.b16 %v154
    %v530 = vunpack.c.l.b16 %v155
    %v531 = vunpack.c.h.b16 %v155
    %v532 = vunpack.c.l.b16 %v156
    %v533 = vunpack.c.h.b16 %v156
    %v534 = vunpack.c.l.b16 %v157
    %v535 = vunpack.c.h.b16 %v157
    %v536 = vunpack.c.l.b16 %v158
    %v537 = vunpack.c.h.b16 %v158
    %v538 = vunpack.c.l.b16 %v159
    %v539 = vunpack.c.h.b16 %v159
    %v540 = vunpack.c.l.b16 %v160
    %v541 = vunpack.c.h.b16 %v160
    %v542 = vunpack.c.l.b16 %v161
    %v543 = vunpack.c.h.b16 %v161
    %v544 = vunpack.c.l.b16 %v162
    %v545 = vunpack.c.h.b16 %v162
    %v546 = vunpack.c.l.b16 %v163
    %v547 = vunpack.c.h.b16 %v163
    %v548 = vunpack.c.l.b16 %v164
    %v549 = vunpack.c.h.b16 %v164
    %v550 = vunpack.c.l.b16 %v165
    %v551 = vunpack.c.h.b16 %v165
    %v552 = vunpack.c.l.b16 %v166
    %v553 = vunpack.c.h.b16 %v166
    %v554 = vunpack.c.l.b16 %v167
    %v555 = vunpack.c.h.b16 %v167
    %v556 = vunpack.c.l.b16 %v168
    %v557 = vunpack.c.h.b16 %v168
    %v558 = vunpack.c.l.b16 %v169
    %v559 = vunpack.c.h.b16 %v169
    %v560 = vunpack.c.l.b16 %v170
    %v561 = vunpack.c.h.b16 %v170
    %v562 = vunpack.c.l.b16 %v171
    %v563 = vunpack.c.h.b16 %v171
    %v564 = vunpack.c.l.b16 %v172
    %v565 = vunpack.c.h.b16 %v172
    %v566 = vunpack.c.l.b16 %v173
    %v567 = vunpack.c.h.b16 %v173
    %v568 = vunpack.c.l.b16 %v174
    %v569 = vunpack.c.h.b16 %v174
    %v570 = vunpack.c.l.b16 %v175
    %v571 = vunpack.c.h.b16 %v175
    %v572 = vunpack.c.l.b16 %v176
    %v573 = vunpack.c.h.b16 %v176
    %v574 = vunpack.c.l.b16 %v177
    %v575 = vunpack.c.h.b16 %v177
    %v576 = vunpack.c.l.b16 %v178
    %v577 = vunpack.c.h.b16 %v178
    %v578 = vunpack.c.l.b16 %v179
    %v579 = vunpack.c.h.b16 %v179
    %v580 = vunpack.c.l.b16 %v180
    %v581 = vunpack.c.h.b16 %v180
    %v582 = vunpack.c.l.b16 %v181
    %v583 = vunpack.c.h.b16 %v181
    %v584 = vunpack.c.l.b16 %v182
    %v585 = vunpack.c.h.b16 %v182
    %v586 = vunpack.c.l.b16 %v183
    %v587 = vunpack.c.h.b16 %v183
    %v588 = vunpack.c.l.b16 %v184
    %v589 = vunpack.c.h.b16 %v184
    %v590 = vunpack.c.l.b16 %v185
    %v591 = vunpack.c.h.b16 %v185
    %v592 = vunpack.c.l.b16 %v186
    %v593 = vunpack.c.h.b16 %v186
    %v594 = vunpack.c.l.b16 %v187
    %v595 = vunpack.c.h.b16 %v187
    %v596 = vunpack.c.l.b16 %v188
    %v597 = vunpack.c.h.b16 %v188
    %v598 = vunpack.c.l.b16 %v189
    %v599 = vunpack.c.h.b16 %v189
    %v600 = vpack.c.b16 %v530, %v528
    %v601 = vpack.c.b16 %v531, %v529
    %v602 = vpack.c.b16 %v534, %v532
    %v603 = vpack.c.b16 %v535, %v533
    %v604 = vpack.c.b16 %v538, %v536
    %v605 = vpack.c.b16 %v539, %v537
    %v606 = vpack.c.b16 %v542, %v540
    %v607 = vpack.c.b16 %v543, %v541
    %v608 = vpack.c.b16 %v546, %v544
    %v609 = vpack.c.b16 %v547, %v545
    %v610 = vpack.c.b16 %v550, %v548
    %v611 = vpack.c.b16 %v551, %v549
    %v612 = vpack.c.b16 %v554, %v552
    %v613 = vpack.c.b16 %v555, %v553
    %v614 = vpack.c.b16 %v558, %v556
    %v615 = vpack.c.b16 %v559, %v557
    %v616 = vpack.c.b16 %v562, %v560
    %v617 = vpack.c.b16 %v563, %v561
    %v618 = vpack.c.b16 %v566, %v564
    %v619 = vpack.c.b16 %v567, %v565
    %v620 = vpack.c.b16 %v570, %v568
    %v621 = vpack.c.b16 %v571, %v569
    %v622 = vpack.c.b16 %v574, %v572
    %v623 = vpack.c.b16 %v575, %v573
    %v624 = vpack.c.b16 %v578, %v576
    %v625 = vpack.c.b16 %v579, %v577
    %v626 = vpack.c.b16 %v582, %v580
    %v627 = vpack.c.b16 %v583, %v581
    %v628 = vpack.c.b16 %v586, %v584
    %v629 = vpack.c.b16 %v587, %v585
    %v630 = vpack.c.b16 %v590, %v588
    %v631 = vpack.c.b16 %v591, %v589
    %v632 = vpack.c.b16 %v594, %v592
    %v633 = vpack.c.b16 %v595, %v593
    %v634 = vpack.c.b16 %v598, %v596
    %v635 = vpack.c.b16 %v599, %v597
    %v673 = vsel %vm406, %v104, 0
    %675 = vmatprep.subr.bf16.mxu0 %v615
    %676 = vmatpush1.bf16.msra.mxu0 %v614
    %677 = vmatprep.subr.bf16.mxu0 %v613
    %678 = vmatpush1.bf16.msra.mxu0 %v612
    %679 = vmatprep.subr.bf16.mxu0 %v611
    %680 = vmatpush1.bf16.msra.mxu0 %v610
    %681 = vmatprep.subr.bf16.mxu0 %v609
    %682 = vmatpush1.bf16.msra.mxu0 %v608
    %683 = vmatprep.subr.bf16.mxu0 %v607
    %684 = vmatpush1.bf16.msra.mxu0 %v606
    %685 = vmatprep.subr.bf16.mxu0 %v605
    %686 = vmatpush1.bf16.msra.mxu0 %v604
    %687 = vmatprep.subr.bf16.mxu0 %v603
    %688 = vmatpush1.bf16.msra.mxu0 %v602
    %689 = vmatprep.subr.bf16.mxu0 %v601
    %690 = vmatpush1.bf16.msra.mxu0 %v600
    %691 = vmatprep.subr.bf16.mxu0 %v631
    %692 = vmatpush2.bf16.msra.mxu0 %v630
    %693 = vmatprep.subr.bf16.mxu0 %v629
    %694 = vmatpush2.bf16.msra.mxu0 %v628
    %695 = vmatprep.subr.bf16.mxu0 %v627
    %696 = vmatpush2.bf16.msra.mxu0 %v626
    %697 = vmatprep.subr.bf16.mxu0 %v625
    %698 = vmatpush2.bf16.msra.mxu0 %v624
    %699 = vmatprep.subr.bf16.mxu0 %v623
    %700 = vmatpush2.bf16.msra.mxu0 %v622
    %701 = vmatprep.subr.bf16.mxu0 %v621
    %702 = vmatpush2.bf16.msra.mxu0 %v620
    %703 = vmatprep.subr.bf16.mxu0 %v619
    %704 = vmatpush2.bf16.msra.mxu0 %v618
    %705 = vmatprep.subr.bf16.mxu0 %v617
    %706 = vmatpush2.bf16.msra.mxu0 %v616
    %707 = vmatprep.mubr.bf16.mxu0 %v103
    %708 = vmatmul.mubr.bf16.gmra.mxu0 %v102
    %v709 = vpop.f32.mrf.mxu0
    %v710 = vadd.f32 %v486, %v709
    %v711 = vpop.f32.mrf.mxu0
    %v712 = vadd.f32 %v488, %v711
    %v713 = vpop.f32.mrf.mxu0
    %v714 = vpop.f32.mrf.mxu0
    %715 = vdwg.mxu0
    %716 = vmatprep.subr.bf16.mxu0 0
    %717 = vmatpush1.bf16.msra.mxu0 0
    %718 = vmatprep.subr.bf16.mxu0 0
    %719 = vmatpush1.bf16.msra.mxu0 0
    %720 = vmatprep.subr.bf16.mxu0 0
    %721 = vmatpush1.bf16.msra.mxu0 0
    %722 = vmatprep.subr.bf16.mxu0 0
    %723 = vmatpush1.bf16.msra.mxu0 0
    %724 = vmatprep.subr.bf16.mxu0 0
    %725 = vmatpush1.bf16.msra.mxu0 0
    %726 = vmatprep.subr.bf16.mxu0 0
    %727 = vmatpush1.bf16.msra.mxu0 0
    %728 = vmatprep.subr.bf16.mxu0 %v635
    %729 = vmatpush1.bf16.msra.mxu0 %v634
    %730 = vmatprep.subr.bf16.mxu0 %v633
    %731 = vmatpush1.bf16.msra.mxu0 %v632
    %732 = vmatprep.subr.bf16.mxu0 0
    %733 = vmatpush2.bf16.msra.mxu0 0
    %734 = vmatprep.subr.bf16.mxu0 0
    %735 = vmatpush2.bf16.msra.mxu0 0
    %736 = vmatprep.subr.bf16.mxu0 0
    %737 = vmatpush2.bf16.msra.mxu0 0
    %738 = vmatprep.subr.bf16.mxu0 0
    %739 = vmatpush2.bf16.msra.mxu0 0
    %740 = vmatprep.subr.bf16.mxu0 0
    %741 = vmatpush2.bf16.msra.mxu0 0
    %742 = vmatprep.subr.bf16.mxu0 0
    %743 = vmatpush2.bf16.msra.mxu0 0
    %744 = vmatprep.subr.bf16.mxu0 0
    %745 = vmatpush2.bf16.msra.mxu0 0
    %746 = vmatprep.subr.bf16.mxu0 0
    %747 = vmatpush2.bf16.msra.mxu0 0
    %748 = vmatprep.mubr.bf16.mxu0 0
    %749 = vmatmul.mubr.bf16.gmra.mxu0 %v673
    %v750 = vpop.f32.mrf.mxu0
    %v751 = vadd.f32 %v710, %v750
    %v752 = vpop.f32.mrf.mxu0
    %v753 = vadd.f32 %v712, %v752
    %v754 = vpop.f32.mrf.mxu0
    %v755 = vpop.f32.mrf.mxu0
    %756 = vdwg.mxu0
    %v757 = vld [vmem:[%s4] sm:$0x3]
    %v759 = vlaneseq
    %v760 = vshrl.u32 %v759, 7
    %v761 = vsub.s32 0, %v760
    %v762 = vrot.slane %v757, %v761
    %v763 = vlaneseq
    %v764 = vshrl.u32 %v763, 7
    %v765 = vsub.s32 1, %v764
    %v766 = vrot.slane %v757, %v765
    %v769 = vadd.f32 %v751, %v762
    %v770 = vadd.f32 %v753, %v766
    %v771 = vmax.f32 %v769, 0.0
    %v772 = vmax.f32 %v770, 0.0
    %v773 = vpack.c.bf16 %v771, %v771
    %v774 = vpack.c.bf16 %v772, %v772
    %v775 = vld [vmem:[%s5] sm:$0xf]
    %v776 = vld [vmem:[%s5 + $0x4] sm:$0xf]
    %v777 = vld [vmem:[%s5 + $0x8] sm:$0xf]
    %v778 = vld [vmem:[%s5 + $0xc] sm:$0xf]
    %v779 = vld [vmem:[%s5 + $0x10] sm:$0xf]
    %v780 = vld [vmem:[%s5 + $0x14] sm:$0xf]
    %v781 = vld [vmem:[%s5 + $0x18] sm:$0xf]
    %v782 = vld [vmem:[%s5 + $0x1c] sm:$0xf]
    %v783 = vld [vmem:[%s5 + $0x20] sm:$0xf]
    %v784 = vld [vmem:[%s5 + $0x24] sm:$0xf]
    %v785 = vld [vmem:[%s5 + $0x28] sm:$0xf]
    %v786 = vld [vmem:[%s5 + $0x2c] sm:$0xf]
    %v787 = vld [vmem:[%s5 + $0x30] sm:$0xf]
    %v788 = vld [vmem:[%s5 + $0x34] sm:$0xf]
    %v789 = vld [vmem:[%s5 + $0x38] sm:$0xf]
    %v790 = vld [vmem:[%s5 + $0x3c] sm:$0xf]
    %v791 = vld [vmem:[%s5 + $0x40] sm:$0xf]
    %v792 = vld [vmem:[%s5 + $0x44] sm:$0xf]
    %v793 = vld [vmem:[%s5 + $0x48] sm:$0xf]
    %v794 = vld [vmem:[%s5 + $0x4c] sm:$0xf]
    %v795 = vld [vmem:[%s5 + $0x50] sm:$0xf]
    %v796 = vld [vmem:[%s5 + $0x54] sm:$0xf]
    %v797 = vld [vmem:[%s5 + $0x58] sm:$0xf]
    %v798 = vld [vmem:[%s5 + $0x5c] sm:$0xf]
    %v799 = vld [vmem:[%s5 + $0x60] sm:$0xf]
    %v800 = vld [vmem:[%s5 + $0x64] sm:$0xf]
    %v801 = vld [vmem:[%s5 + $0x68] sm:$0xf]
    %v802 = vld [vmem:[%s5 + $0x6c] sm:$0xf]
    %v803 = vld [vmem:[%s5 + $0x70] sm:$0xf]
    %v804 = vld [vmem:[%s5 + $0x74] sm:$0xf]
    %v805 = vld [vmem:[%s5 + $0x78] sm:$0xf]
    %v806 = vld [vmem:[%s5 + $0x7c] sm:$0xf]
    %v807 = vld [vmem:[%s6] sm:$0x1]
    %v809 = vlaneseq
    %v810 = vshrl.u32 %v809, 7
    %v811 = vsub.s32 0, %v810
    %v812 = vrot.slane %v807, %v811
    %v846 = vunpack.c.l.b16 %v775
    %v847 = vunpack.c.l.b16 %v776
    %v848 = vunpack.c.l.b16 %v777
    %v849 = vunpack.c.l.b16 %v778
    %v850 = vunpack.c.l.b16 %v779
    %v851 = vunpack.c.l.b16 %v780
    %v852 = vunpack.c.l.b16 %v781
    %v853 = vunpack.c.l.b16 %v782
    %v854 = vunpack.c.l.b16 %v783
    %v855 = vunpack.c.l.b16 %v784
    %v856 = vunpack.c.l.b16 %v785
    %v857 = vunpack.c.l.b16 %v786
    %v858 = vunpack.c.l.b16 %v787
    %v859 = vunpack.c.l.b16 %v788
    %v860 = vunpack.c.l.b16 %v789
    %v861 = vunpack.c.l.b16 %v790
    %v862 = vunpack.c.l.b16 %v791
    %v863 = vunpack.c.l.b16 %v792
    %v864 = vunpack.c.l.b16 %v793
    %v865 = vunpack.c.l.b16 %v794
    %v866 = vunpack.c.l.b16 %v795
    %v867 = vunpack.c.l.b16 %v796
    %v868 = vunpack.c.l.b16 %v797
    %v869 = vunpack.c.l.b16 %v798
    %v870 = vunpack.c.l.b16 %v799
    %v871 = vunpack.c.l.b16 %v800
    %v872 = vunpack.c.l.b16 %v801
    %v873 = vunpack.c.l.b16 %v802
    %v874 = vunpack.c.l.b16 %v803
    %v875 = vunpack.c.l.b16 %v804
    %v876 = vunpack.c.l.b16 %v805
    %v877 = vunpack.c.l.b16 %v806
    %v878 = vpack.c.b16 %v847, %v846
    %v879 = vpack.c.b16 %v849, %v848
    %v880 = vpack.c.b16 %v851, %v850
    %v881 = vpack.c.b16 %v853, %v852
    %v882 = vpack.c.b16 %v855, %v854
    %v883 = vpack.c.b16 %v857, %v856
    %v884 = vpack.c.b16 %v859, %v858
    %v885 = vpack.c.b16 %v861, %v860
    %v886 = vpack.c.b16 %v863, %v862
    %v887 = vpack.c.b16 %v865, %v864
    %v888 = vpack.c.b16 %v867, %v866
    %v889 = vpack.c.b16 %v869, %v868
    %v890 = vpack.c.b16 %v871, %v870
    %v891 = vpack.c.b16 %v873, %v872
    %v892 = vpack.c.b16 %v875, %v874
    %v893 = vpack.c.b16 %v877, %v876
    %910 = vmatprep.subr.bf16.mxu0 0
    %911 = vmatpush1.bf16.msra.mxu0 %v885
    %912 = vmatprep.subr.bf16.mxu0 0
    %913 = vmatpush1.bf16.msra.mxu0 %v884
    %914 = vmatprep.subr.bf16.mxu0 0
    %915 = vmatpush1.bf16.msra.mxu0 %v883
    %916 = vmatprep.subr.bf16.mxu0 0
    %917 = vmatpush1.bf16.msra.mxu0 %v882
    %918 = vmatprep.subr.bf16.mxu0 0
    %919 = vmatpush1.bf16.msra.mxu0 %v881
    %920 = vmatprep.subr.bf16.mxu0 0
    %921 = vmatpush1.bf16.msra.mxu0 %v880
    %922 = vmatprep.subr.bf16.mxu0 0
    %923 = vmatpush1.bf16.msra.mxu0 %v879
    %924 = vmatprep.subr.bf16.mxu0 0
    %925 = vmatpush1.bf16.msra.mxu0 %v878
    %926 = vmatprep.subr.bf16.mxu0 0
    %927 = vmatpush2.bf16.msra.mxu0 %v893
    %928 = vmatprep.subr.bf16.mxu0 0
    %929 = vmatpush2.bf16.msra.mxu0 %v892
    %930 = vmatprep.subr.bf16.mxu0 0
    %931 = vmatpush2.bf16.msra.mxu0 %v891
    %932 = vmatprep.subr.bf16.mxu0 0
    %933 = vmatpush2.bf16.msra.mxu0 %v890
    %934 = vmatprep.subr.bf16.mxu0 0
    %935 = vmatpush2.bf16.msra.mxu0 %v889
    %936 = vmatprep.subr.bf16.mxu0 0
    %937 = vmatpush2.bf16.msra.mxu0 %v888
    %938 = vmatprep.subr.bf16.mxu0 0
    %939 = vmatpush2.bf16.msra.mxu0 %v887
    %940 = vmatprep.subr.bf16.mxu0 0
    %941 = vmatpush2.bf16.msra.mxu0 %v886
    %942 = vmatprep.mubr.bf16.mxu0 %v774
    %943 = vmatmul.mubr.bf16.gmra.mxu0 %v773
    %v944 = vpop.f32.mrf.mxu0
    %v945 = vadd.f32 %v812, %v944
    %v946 = vpop.f32.mrf.mxu0
    %v947 = vpop.f32.mrf.mxu0
    %v948 = vpop.f32.mrf.mxu0
    %949 = vdwg.mxu0
    %vm950 = vcmask 97280
    %v951 = vsel %vm950, %v945, -inf
    %952 = vmax.xlane.f32.xlu0 %v951
    %v953 = vpop.xlane.xlu0 %952
    %v954 = vsub.f32 %v945, %v953
    %v955 = vmul.f32 %v954, 1.442695
    %v956 = vpow.pop %v955
    %v957 = vsel %vm950, %v956, 0.0
    %958 = vadd.xlane.f32.xlu0 %v957
    %v959 = vpop.xlane.xlu0 %958
    %v960 = vrcp.pop %v959
    %v961 = vmul.f32 %v956, %v960
    %962 = vst.msk [vmem:[#allocation7] sm:$0xff] %vm950, %v961
    // Predicated region
    $region38: #{tpu_custom_call.1} parent=1 // pred_check
      _
    $region39: #{tpu_custom_call.1} parent=1 // pred_check_branch
      %964 = sbr.rel (0) target = $region41
    $region40: #{tpu_custom_call.1} parent=1 // pred_region
      %s966 = ssub.s32 128, 32
      %967 = vsyncadd [#allocation4], %s966
      %s968 = sshll.u32 [#allocation7], 4
      %s969 = int_to_ptr.vmem [resolvable:$true] %s968
      %974 = dma.vmem_to_hbm [thread:$0]  %s969, 32, %s7, [#allocation4], 32, 32, 2
    $region41: #{tpu_custom_call.1} parent=1 // pred_fallthru
      _
    // Predicated region
    $region42: #{tpu_custom_call.1} parent=1 // pred_check
      _
    $region43: #{tpu_custom_call.1} parent=1 // pred_check_branch
      %976 = sbr.rel (0) target = $region45
    $region44: #{tpu_custom_call.1} parent=1 // pred_region
      %977 = dma.done [#allocation4], 128
    $region45: #{tpu_custom_call.1} parent=1 // pred_fallthru
      _
    %978 = vsyncpa [#allocation3], 1
    %979 = vsyncpa [#allocation6], 1
    %980 = vsyncpa [#allocation4], 1

</llo_original>
